<compile_context>
chip_gen: v6e
topology: v6e:2x2x1
jax: 0.10.0
libtpu: 0.0.40
codegen_flags: <defaults>
</compile_context>

<pallas_src>
import math

import jax
import jax.numpy as jnp
from jax import lax
from jax.experimental import pallas as pl
from jax.experimental.pallas import tpu as pltpu


def _round_up(a, b):
    return ((a + b - 1) // b) * b


# ----------------------------------------------------------------------------
# Kernels
# ----------------------------------------------------------------------------
def _folded_dense_kernel(x_ref, w_ref, b_ref, o_ref):
    # x_ref: (TBF, 128)  VMEM   (fold original rows packed along lanes)
    # w_ref: (128, 128)  VMEM   block-diagonal blockdiag(W^T, ..., W^T)
    # b_ref: (1, 128)    VMEM   bias tiled `fold` times
    # o_ref: (TBF, 128)  VMEM
    y = jnp.dot(x_ref[...], w_ref[...], preferred_element_type=jnp.float32)
    o_ref[...] = (y + b_ref[...]).astype(o_ref.dtype)


def _transb_kernel(x_ref, w_ref, b_ref, o_ref):
    # Fallback (un-folded) kernel, W kept in PyTorch [F_out, F_in] layout and
    # contracted on its last axis (MXU trans-B path).
    y = lax.dot_general(
        x_ref[...],
        w_ref[...],
        dimension_numbers=(((1,), (1,)), ((), ())),
        preferred_element_type=jnp.float32,
    )
    o_ref[...] = (y + b_ref[...]).astype(o_ref.dtype)


# ----------------------------------------------------------------------------
# Wrappers
# ----------------------------------------------------------------------------
def _sigma_linear_folded(x, params, tb):
    """Lane-folded path: requires B % fold == 0 and F_out == F_in."""
    B, F_in = x.shape
    fold = params["fold"]
    lanes = fold * F_in                     # 128 for kpts=16
    Bf = B // fold
    xf = x.reshape(Bf, lanes)               # free, contiguous reinterpretation
    wf = params["weight_folded"]            # (lanes, lanes)
    bf = params["bias_folded"]              # (1, lanes)

    # Folded rows per tile; ~2 MiB x-tile (f32) at the default tb=16384.
    tbf_max = max(8, (tb // fold) // 8 * 8)

    if Bf <= tbf_max:
        out = pl.pallas_call(
            _folded_dense_kernel,
            out_shape=jax.ShapeDtypeStruct((Bf, lanes), x.dtype),
            in_specs=[
                pl.BlockSpec(memory_space=pltpu.MemorySpace.VMEM),
                pl.BlockSpec(memory_space=pltpu.MemorySpace.VMEM),
                pl.BlockSpec(memory_space=pltpu.MemorySpace.VMEM),
            ],
            out_specs=pl.BlockSpec(memory_space=pltpu.MemorySpace.VMEM),
        )(xf, wf, bf)
        return out.reshape(B, F_in)

    # Gridded path: stream x/out tiles, weight & bias VMEM-resident.
    num_tiles = pl.cdiv(Bf, tbf_max)
    if num_tiles > 1 and num_tiles % 2 == 1:
        num_tiles += 1                      # even tile count -> v7x 2-TC balance
    tbf = _round_up(pl.cdiv(Bf, num_tiles), 8)
    num_tiles = pl.cdiv(Bf, tbf)            # ragged last tile masked by Pallas

    out = pl.pallas_call(
        _folded_dense_kernel,
        out_shape=jax.ShapeDtypeStruct((Bf, lanes), x.dtype),
        grid=(num_tiles,),
        in_specs=[
            pl.BlockSpec((tbf, lanes), lambda i: (i, 0)),
            pl.BlockSpec((lanes, lanes), lambda i: (0, 0)),
            pl.BlockSpec((1, lanes), lambda i: (0, 0)),
        ],
        out_specs=pl.BlockSpec((tbf, lanes), lambda i: (i, 0)),
        compiler_params=pltpu.CompilerParams(
            dimension_semantics=("parallel",),
        ),
    )(xf, wf, bf)
    return out.reshape(B, F_in)


def _sigma_linear_plain(x, weight, bias_2d, tb):
    """Un-folded fallback (fold == 1, or B not a multiple of fold)."""
    B, F_in = x.shape
    F_out = weight.shape[0]
    tb_rows = max(8, (tb // 8) * 8)

    if B <= tb_rows:
        return pl.pallas_call(
            _transb_kernel,
            out_shape=jax.ShapeDtypeStruct((B, F_out), x.dtype),
            in_specs=[
                pl.BlockSpec(memory_space=pltpu.MemorySpace.VMEM),
                pl.BlockSpec(memory_space=pltpu.MemorySpace.VMEM),
                pl.BlockSpec(memory_space=pltpu.MemorySpace.VMEM),
            ],
            out_specs=pl.BlockSpec(memory_space=pltpu.MemorySpace.VMEM),
        )(x, weight, bias_2d)

    num_tiles = pl.cdiv(B, tb_rows)
    if num_tiles > 1 and num_tiles % 2 == 1:
        num_tiles += 1
    tb_r = _round_up(pl.cdiv(B, num_tiles), 8)
    num_tiles = pl.cdiv(B, tb_r)             # ragged last tile masked by Pallas

    return pl.pallas_call(
        _transb_kernel,
        out_shape=jax.ShapeDtypeStruct((B, F_out), x.dtype),
        grid=(num_tiles,),
        in_specs=[
            pl.BlockSpec((tb_r, F_in), lambda i: (i, 0)),
            pl.BlockSpec((F_out, F_in), lambda i: (0, 0)),
            pl.BlockSpec((1, F_out), lambda i: (0, 0)),
        ],
        out_specs=pl.BlockSpec((tb_r, F_out), lambda i: (i, 0)),
        compiler_params=pltpu.CompilerParams(
            dimension_semantics=("parallel",),
        ),
    )(x, weight, bias_2d)


def sigma_linear(x, params, *, tb=16384, jnp_fallback_batch=64):
    """Forward of Sigma_linear:  y = x @ W^T + b.

    x:      [B, F]   (F = kpts * 2)
    params: dict from init_sigma_linear_params (holds both the PyTorch-layout
            weight/bias and the lane-folded block-diagonal versions).
    tb:     batch-tile size in ORIGINAL rows (default 16384 -> ~8 MiB
            double-buffered folded tiles; fits v5e's 16 MiB scoped VMEM).
    jnp_fallback_batch: for B at/below this, emit plain jnp so XLA can fuse
            the tiny GEMV with surrounding ops instead of a custom call.
    """
    B, F_in = x.shape
    if B <= jnp_fallback_batch:
        return x @ params["weight"].T + params["bias"]

    fold = params["fold"]
    if fold > 1 and B % fold == 0:
        return _sigma_linear_folded(x, params, tb)
    return _sigma_linear_plain(x, params["weight"], params["bias"], tb)


# ----------------------------------------------------------------------------
# Init (matches the PyTorch module's __init__)
# ----------------------------------------------------------------------------
def init_sigma_linear_params(key, kpts, dtype=jnp.float32):
    """weight: xavier_uniform_(gain=0.01) on [out, in]; bias: nn.Linear default.

    Also precomputes (once) the lane-folded 128x128 block-diagonal weight and
    tiled bias so the hot call path has zero per-call layout work.
    """
    F = kpts * 2
    k_w, k_b = jax.random.split(key)

    gain = 0.01
    bound_w = gain * math.sqrt(6.0 / (F + F))
    weight = jax.random.uniform(k_w, (F, F), dtype=dtype,
                                minval=-bound_w, maxval=bound_w)

    bound_b = 1.0 / math.sqrt(F)
    bias = jax.random.uniform(k_b, (1, F), dtype=dtype,
                              minval=-bound_b, maxval=bound_b)

    fold = 128 // F if (F <= 128 and 128 % F == 0) else 1
    params = {"weight": weight, "bias": bias, "fold": fold}
    if fold > 1:
        # blockdiag(W^T, ..., W^T)  -> (fold*F, fold*F) == (128, 128)
        params["weight_folded"] = jnp.kron(jnp.eye(fold, dtype=dtype), weight.T)
        params["bias_folded"] = jnp.tile(bias, (1, fold))
    return params


# ----------------------------------------------------------------------------
# Self-test
# ----------------------------------------------------------------------------
if __name__ == "__main__":
    key = jax.random.PRNGKey(0)
    k_param, k_x1, k_x2, k_x3 = jax.random.split(key, 4)

    kpts = 16                       # -> F_in = F_out = 32, fold = 4
    params = init_sigma_linear_params(k_param, kpts)
    W, b = params["weight"], params["bias"]

    def ref(xv):
        return jnp.dot(xv, W.T, precision=jax.lax.Precision.HIGHEST) + b

    # 1) Small batch forced through the Pallas lane-folded path (no grid).
    x1 = jax.random.normal(k_x1, (8, kpts * 2), dtype=jnp.float32)
    y1 = jax.block_until_ready(sigma_linear(x1, params, jnp_fallback_batch=0))
    assert y1.shape == (8, kpts * 2)
    assert jnp.allclose(y1, ref(x1), atol=1e-5, rtol=1e-5)

    # 2) Ragged batch not divisible by fold -> un-folded Pallas fallback.
    x2 = jax.random.normal(k_x2, (2053, kpts * 2), dtype=jnp.float32)
    y2 = jax.block_until_ready(sigma_linear(x2, params))
    assert y2.shape == (2053, kpts * 2)
    assert jnp.allclose(y2, ref(x2), atol=1e-5, rtol=1e-5)

    # 3) Large batch -> folded, gridded path (even tile count, ragged last
    #    tile handled by Pallas masking, no pad/slice).
    x3 = jax.random.normal(k_x3, (20000, kpts * 2), dtype=jnp.float32)
    y3 = jax.block_until_ready(sigma_linear(x3, params))
    assert y3.shape == (20000, kpts * 2)
    assert jnp.allclose(y3, ref(x3), atol=1e-5, rtol=1e-5)

    # 4) Tiny-batch jnp fast path keeps identical semantics.
    y_tiny = jax.block_until_ready(sigma_linear(x1, params))
    assert jnp.allclose(y_tiny, ref(x1), atol=1e-5, rtol=1e-5)

    print("KERNEL_OK")
</pallas_src>

<mosaic_0001>
module attributes {stable_mosaic.version = 11 : i64} {
  func.func @_folded_dense_kernel(%arg0: memref<2x128xf32, #tpu.memory_space<vmem>>, %arg1: memref<128x128xf32, #tpu.memory_space<vmem>>, %arg2: memref<1x128xf32, #tpu.memory_space<vmem>>, %arg3: memref<2x128xf32, #tpu.memory_space<vmem>>) attributes {dimension_semantics = [], scalar_prefetch = 0 : i64, scratch_operands = 0 : i64, tpu.core_type = #tpu.core_type<tc>} {
    %c0 = arith.constant 0 : index
    %c0_0 = arith.constant 0 : index
    %0 = vector.load %arg0[%c0, %c0_0] : memref<2x128xf32, #tpu.memory_space<vmem>>, vector<2x128xf32>
    %c0_1 = arith.constant 0 : index
    %c0_2 = arith.constant 0 : index
    %1 = vector.load %arg1[%c0_1, %c0_2] : memref<128x128xf32, #tpu.memory_space<vmem>>, vector<128x128xf32>
    %cst = arith.constant dense<0.000000e+00> : vector<2x128xf32>
    %2 = tpu.matmul %0, %1, %cst {dimension_numbers = #tpu.dot_dimension_numbers<[1], [0], [0], [1], [0, 0, 1, 1], [], []>} : vector<2x128xf32>, vector<128x128xf32>, vector<2x128xf32> -> vector<2x128xf32>
    %c0_3 = arith.constant 0 : index
    %c0_4 = arith.constant 0 : index
    %3 = vector.load %arg2[%c0_3, %c0_4] : memref<1x128xf32, #tpu.memory_space<vmem>>, vector<1x128xf32>
    %4 = vector.broadcast %3 : vector<1x128xf32> to vector<2x128xf32>
    %5 = arith.addf %2, %4 : vector<2x128xf32>
    %c0_5 = arith.constant 0 : index
    %c0_6 = arith.constant 0 : index
    %6 = vector.load %arg3[%c0_5, %c0_6] : memref<2x128xf32, #tpu.memory_space<vmem>>, vector<2x128xf32>
    tpu.vector_store %arg3[%c0_5, %c0_6], %5 {strides = array<i32>} : memref<2x128xf32, #tpu.memory_space<vmem>>, vector<2x128xf32>,
    return
  }
}

</mosaic_0001>

<llo_original>
// kernel: tpu_custom_call.1
$region0: #{tpu_custom_call.1}
  #allocation0 [shape = 'u32[]', space=smem, size = 0x4, offset = 0x4, fixed_abs, tag = 'smem constant byte address 0x4 - core index']
  #allocation1 [shape = 'u32[144,128]{1,0:T(1,128)}', space=vmem, size = 0x12000, scoped, tag = 'internal scratch']
  %s0 = inlined_call_operand.hbm [shape: f32[2,128], index: 0, kind: input, shape index: {}]
  %s1 = inlined_call_operand.hbm [shape: f32[128,128], index: 1, kind: input, shape index: {}]
  %s2 = inlined_call_operand.vmem [shape: f32[1,128], index: 2, kind: input, shape index: {}]
  %s3 = inlined_call_operand.hbm [shape: f32[2,128], index: 3, kind: output, shape index: {}]
  %s4 = sld [smem:[#allocation0]]
  $region30: #{tpu_custom_call.1} parent=0
    _
  %s6 = ssub.s32 1, %s4
  %s7 = scalar_select 0, %s6, %s4
  $region1: #{tpu_custom_call.1} parent=0
    #allocation2 [shape = 'u8[1024]{0}', space=vmem, size = 0x400, scoped, tag = 'input window, operand 0, single buffered']
    #allocation3 [shape = 's32[1]{0}', space=sflag, size = 0x4, scoped, tag = 'scoped memory for tpu_custom_call.1']
    #allocation4 [shape = 's32[1]{0}', space=sflag, size = 0x4, scoped, tag = 'scoped memory for tpu_custom_call.1']
    #allocation5 [shape = 'u8[65536]{0}', space=vmem, size = 0x10000, scoped, tag = 'input window, operand 1, single buffered']
    #allocation6 [shape = 's32[1]{0}', space=sflag, size = 0x4, scoped, tag = 'scoped memory for tpu_custom_call.1']
    #allocation7 [shape = 'u8[1024]{0}', space=vmem, size = 0x400, scoped, tag = 'output window, operand 0, single buffered']
    %8 = vsyncpa [#allocation3], 0
    %9 = vsyncpa [#allocation6], 0
    %10 = vsyncpa [#allocation4], 0
    // Predicated region
    $region2: #{tpu_custom_call.1} parent=1 // pred_check
      _
    $region3: #{tpu_custom_call.1} parent=1 // pred_check_branch
      %12 = sbr.rel (0) target = $region5
    $region4: #{tpu_custom_call.1} parent=1 // pred_region
      %s14 = ssub.s32 32, 32
      %15 = vsyncadd [#allocation3], %s14
      %s17 = sshll.u32 [#allocation2], 4
      %s18 = int_to_ptr.vmem [resolvable:$true] %s17
      %20 = dma.hbm_to_vmem [thread:$0]  %s0, 32, %s18, [#allocation3]
    $region5: #{tpu_custom_call.1} parent=1 // pred_fallthru
      _
    // Predicated region
    $region6: #{tpu_custom_call.1} parent=1 // pred_check
      _
    $region7: #{tpu_custom_call.1} parent=1 // pred_check_branch
      %22 = sbr.rel (0) target = $region9
    $region8: #{tpu_custom_call.1} parent=1 // pred_region
      %s24 = ssub.s32 2048, 2048
      %25 = vsyncadd [#allocation6], %s24
      %s26 = sshll.u32 [#allocation5], 4
      %s27 = int_to_ptr.vmem [resolvable:$true] %s26
      %32 = dma.hbm_to_vmem [thread:$0]  %s1, 2048, %s27, [#allocation6], 128, 128, 8
    $region9: #{tpu_custom_call.1} parent=1 // pred_fallthru
      _
    // Predicated region
    $region10: #{tpu_custom_call.1} parent=1 // pred_check
      _
    $region11: #{tpu_custom_call.1} parent=1 // pred_check_branch
      %34 = sbr.rel (0) target = $region13
    $region12: #{tpu_custom_call.1} parent=1 // pred_region
      _
    $region13: #{tpu_custom_call.1} parent=1 // pred_fallthru
      _
    // Predicated region
    $region14: #{tpu_custom_call.1} parent=1 // pred_check
      _
    $region15: #{tpu_custom_call.1} parent=1 // pred_check_branch
      %36 = sbr.rel (0) target = $region17
    $region16: #{tpu_custom_call.1} parent=1 // pred_region
      %37 = dma.done [#allocation3], 32
    $region17: #{tpu_custom_call.1} parent=1 // pred_fallthru
      _
    // Predicated region
    $region18: #{tpu_custom_call.1} parent=1 // pred_check
      _
    $region19: #{tpu_custom_call.1} parent=1 // pred_check_branch
      %39 = sbr.rel (0) target = $region21
    $region20: #{tpu_custom_call.1} parent=1 // pred_region
      %40 = dma.done [#allocation6], 2048
    $region21: #{tpu_custom_call.1} parent=1 // pred_fallthru
      _
    %v41 = vld [vmem:[#allocation2] sm:$0x3]
    %v42 = vld [vmem:[#allocation5] sm:$0xff]
    %v43 = vld [vmem:[#allocation5 + $0x8] sm:$0xff]
    %v44 = vld [vmem:[#allocation5 + $0x10] sm:$0xff]
    %v45 = vld [vmem:[#allocation5 + $0x18] sm:$0xff]
    %v46 = vld [vmem:[#allocation5 + $0x20] sm:$0xff]
    %v47 = vld [vmem:[#allocation5 + $0x28] sm:$0xff]
    %v48 = vld [vmem:[#allocation5 + $0x30] sm:$0xff]
    %v49 = vld [vmem:[#allocation5 + $0x38] sm:$0xff]
    %v50 = vld [vmem:[#allocation5 + $0x40] sm:$0xff]
    %v51 = vld [vmem:[#allocation5 + $0x48] sm:$0xff]
    %v52 = vld [vmem:[#allocation5 + $0x50] sm:$0xff]
    %v53 = vld [vmem:[#allocation5 + $0x58] sm:$0xff]
    %v54 = vld [vmem:[#allocation5 + $0x60] sm:$0xff]
    %v55 = vld [vmem:[#allocation5 + $0x68] sm:$0xff]
    %v56 = vld [vmem:[#allocation5 + $0x70] sm:$0xff]
    %v57 = vld [vmem:[#allocation5 + $0x78] sm:$0xff]
    %v58 = vld [vmem:[%s2] sm:$0x1]
    %v60 = vlaneseq
    %v61 = vshrl.u32 %v60, 7
    %v62 = vsub.s32 0, %v61
    %v63 = vrot.slane %v58, %v62
    %65 = vmatprep.subr.mxu0 0.0
    %66 = vmatpush1.msra.mxu0 %v57
    %67 = vmatprep.subr.mxu0 0.0
    %68 = vmatpush1.msra.mxu0 %v56
    %69 = vmatprep.subr.mxu0 0.0
    %70 = vmatpush1.msra.mxu0 %v55
    %71 = vmatprep.subr.mxu0 0.0
    %72 = vmatpush1.msra.mxu0 %v54
    %73 = vmatprep.subr.mxu0 0.0
    %74 = vmatpush1.msra.mxu0 %v53
    %75 = vmatprep.subr.mxu0 0.0
    %76 = vmatpush1.msra.mxu0 %v52
    %77 = vmatprep.subr.mxu0 0.0
    %78 = vmatpush1.msra.mxu0 %v51
    %79 = vmatprep.subr.mxu0 0.0
    %80 = vmatpush1.msra.mxu0 %v50
    %81 = vmatprep.subr.mxu0 0.0
    %82 = vmatpush1.msra.mxu0 %v49
    %83 = vmatprep.subr.mxu0 0.0
    %84 = vmatpush1.msra.mxu0 %v48
    %85 = vmatprep.subr.mxu0 0.0
    %86 = vmatpush1.msra.mxu0 %v47
    %87 = vmatprep.subr.mxu0 0.0
    %88 = vmatpush1.msra.mxu0 %v46
    %89 = vmatprep.subr.mxu0 0.0
    %90 = vmatpush1.msra.mxu0 %v45
    %91 = vmatprep.subr.mxu0 0.0
    %92 = vmatpush1.msra.mxu0 %v44
    %93 = vmatprep.subr.mxu0 0.0
    %94 = vmatpush1.msra.mxu0 %v43
    %95 = vmatprep.subr.mxu0 0.0
    %96 = vmatpush1.msra.mxu0 %v42
    %97 = vmatprep.subr.mxu0 0.0
    %98 = vmatpush2.msra.mxu0 0.0
    %99 = vmatprep.subr.mxu0 0.0
    %100 = vmatpush2.msra.mxu0 0.0
    %101 = vmatprep.subr.mxu0 0.0
    %102 = vmatpush2.msra.mxu0 0.0
    %103 = vmatprep.subr.mxu0 0.0
    %104 = vmatpush2.msra.mxu0 0.0
    %105 = vmatprep.subr.mxu0 0.0
    %106 = vmatpush2.msra.mxu0 0.0
    %107 = vmatprep.subr.mxu0 0.0
    %108 = vmatpush2.msra.mxu0 0.0
    %109 = vmatprep.subr.mxu0 0.0
    %110 = vmatpush2.msra.mxu0 0.0
    %111 = vmatprep.subr.mxu0 0.0
    %112 = vmatpush2.msra.mxu0 0.0
    %113 = vmatprep.subr.mxu0 0.0
    %114 = vmatpush2.msra.mxu0 0.0
    %115 = vmatprep.subr.mxu0 0.0
    %116 = vmatpush2.msra.mxu0 0.0
    %117 = vmatprep.subr.mxu0 0.0
    %118 = vmatpush2.msra.mxu0 0.0
    %119 = vmatprep.subr.mxu0 0.0
    %120 = vmatpush2.msra.mxu0 0.0
    %121 = vmatprep.subr.mxu0 0.0
    %122 = vmatpush2.msra.mxu0 0.0
    %123 = vmatprep.subr.mxu0 0.0
    %124 = vmatpush2.msra.mxu0 0.0
    %125 = vmatprep.subr.mxu0 0.0
    %126 = vmatpush2.msra.mxu0 0.0
    %127 = vmatprep.subr.mxu0 0.0
    %128 = vmatpush2.msra.mxu0 0.0
    %129 = vmatprep.mubr.f32.mxu0 0.0
    %130 = vmatmul.mubr.f32.gmra.mxu0 %v41
    %v131 = vpop.f32.mrf.mxu0
    %v132 = vadd.f32 %v63, %v131
    %v133 = vpop.f32.mrf.mxu0
    %134 = vdwg.mxu0
    %135 = vst [vmem:[#allocation7] sm:$0x3] %v132
    // Predicated region
    $region22: #{tpu_custom_call.1} parent=1 // pred_check
      _
    $region23: #{tpu_custom_call.1} parent=1 // pred_check_branch
      %137 = sbr.rel (0) target = $region25
    $region24: #{tpu_custom_call.1} parent=1 // pred_region
      %s139 = ssub.s32 32, 32
      %140 = vsyncadd [#allocation4], %s139
      %s142 = sshll.u32 [#allocation7], 4
      %s143 = int_to_ptr.vmem [resolvable:$true] %s142
      %145 = dma.vmem_to_hbm [thread:$0]  %s143, 32, %s3, [#allocation4]
    $region25: #{tpu_custom_call.1} parent=1 // pred_fallthru
      _
    // Predicated region
    $region26: #{tpu_custom_call.1} parent=1 // pred_check
      _
    $region27: #{tpu_custom_call.1} parent=1 // pred_check_branch
      %147 = sbr.rel (0) target = $region29
    $region28: #{tpu_custom_call.1} parent=1 // pred_region
      %148 = dma.done [#allocation4], 32
    $region29: #{tpu_custom_call.1} parent=1 // pred_fallthru
      _
    %149 = vsyncpa [#allocation3], 1
    %150 = vsyncpa [#allocation6], 1
    %151 = vsyncpa [#allocation4], 1

</llo_original>
